<compile_context>
chip_gen: v7x
topology: tpu7x:2x2x1
jax: 0.10.0
libtpu: 0.0.40
codegen_flags: <defaults>
</compile_context>

<pallas_src>
import functools

import jax
import jax.numpy as jnp
from jax import lax
from jax.experimental import pallas as pl
from jax.experimental.pallas import tpu as pltpu


# ---------------------------------------------------------------------------
# Fused 3x3 conv (stride 1, pad 1) + bias + ReLU for one batch image.
#   x_ref : (1, Cin, H*W)   NCHW-native input, spatial flattened on lanes (f32)
#   w_ref : (9, Cout, Cin)  per-tap transposed weights (bf16)
#   b_ref : (Cout, 1)       bias (f32)
#   o_ref : (1, Cout, H*W)  lane-dense output (f32); reshapes to NCHW for free
# ---------------------------------------------------------------------------
def _conv3x3_relu_kernel(x_ref, w_ref, b_ref, o_ref, *, h, w, cin, cout):
    hw = h * w
    guard = w + 1  # zero halo on each end of the flat spatial axis

    # bf16 MXU operands (f32 accumulation below).
    xb = x_ref[0].astype(jnp.bfloat16)                        # (Cin, H*W)

    # In-kernel "padding": zero guards stand in for the top/bottom halo rows
    # (and the corner cases), so no wrapper-side jnp.pad HBM pass is needed.
    zg = jnp.zeros((cin, guard), jnp.bfloat16)
    xg = jnp.concatenate([zg, xb, zg], axis=1)                # (Cin, H*W + 2W + 2)

    # Column-edge masks, hoisted out of the tap loop.  Only dw != 1 taps need
    # masking; row out-of-range reads always land in the zero guard (or are
    # caught by these same column masks).
    col = lax.broadcasted_iota(jnp.int32, (cin, hw), 1) % w
    m_left = col != 0            # kills the w == 0 column     (dw == 0 taps)
    m_right = col != (w - 1)     # kills the w == W-1 column   (dw == 2 taps)

    wv = w_ref[...]                                           # (9, Cout, Cin) bf16

    # 9 accumulated MXU matmuls (no im2col concat, no 9x patch temp):
    #   acc(Cout, H*W) += w_tap(Cout, Cin) @ x_shift(Cin, H*W)
    # For output position p = h*W + w and tap (dh, dw), the source element is
    # xg[:, p + dh*W + dw], i.e. a static lane-offset slice of the flat image.
    acc = jnp.zeros((cout, hw), jnp.float32)
    for dh in range(3):
        for dw in range(3):
            start = dh * w + dw
            x_sl = xg[:, start:start + hw]                    # (Cin, H*W)
            if dw == 0:
                x_sl = jnp.where(m_left, x_sl, 0)
            elif dw == 2:
                x_sl = jnp.where(m_right, x_sl, 0)
            acc = acc + jnp.dot(wv[dh * 3 + dw], x_sl,
                                preferred_element_type=jnp.float32)

    # Fused epilogue on the VPU, kept in f32 (v5e has no native bf16 VPU):
    # bias broadcast along lanes + ReLU.
    acc = jnp.maximum(acc + b_ref[...], 0.0)

    # Lane-dense store: (Cout=24 sublanes) x (H*W multiple-of-128 lanes)
    # -> unmasked vector stores.
    o_ref[0] = acc.astype(o_ref.dtype)


def simple_block_forward(x_nchw, weight_hwio, bias):
    """Conv2d(24, 24, k=3, s=1, p=1) + ReLU.

    x_nchw      : (N, Cin, H, W)      float32
    weight_hwio : (3, 3, Cin, Cout)   float32
    bias        : (Cout,)             float32
    returns     : (N, Cout, H, W)     float32
    """
    n, cin, h, w = x_nchw.shape
    kh, kw, _, cout = weight_hwio.shape
    assert (kh, kw) == (3, 3)
    hw = h * w

    # NCHW-native: flattening spatial is a contiguous (free) reshape — no
    # transpose and no pad HBM passes on the activation.
    x_flat = x_nchw.reshape(n, cin, hw).astype(jnp.float32)

    # Tiny constants: per-tap transposed weights (Cout, Cin) pre-cast to bf16
    # for the MXU; bias as (Cout, 1) for a lane broadcast in the epilogue.
    wt = jnp.transpose(weight_hwio.reshape(kh * kw, cin, cout),
                       (0, 2, 1)).astype(jnp.bfloat16)
    b2 = bias.reshape(cout, 1).astype(jnp.float32)

    kernel = functools.partial(_conv3x3_relu_kernel, h=h, w=w, cin=cin, cout=cout)

    out_flat = pl.pallas_call(
        kernel,
        out_shape=jax.ShapeDtypeStruct((n, cout, hw), jnp.float32),
        grid_spec=pltpu.PrefetchScalarGridSpec(
            num_scalar_prefetch=0,
            grid=(n,),  # batch on a "parallel" axis -> both v7x TCs get work
            in_specs=[
                pl.BlockSpec((1, cin, hw), lambda i: (i, 0, 0)),
                pl.BlockSpec((kh * kw, cout, cin), lambda i: (0, 0, 0)),
                pl.BlockSpec((cout, 1), lambda i: (0, 0)),
            ],
            out_specs=pl.BlockSpec((1, cout, hw), lambda i: (i, 0, 0)),
        ),
        compiler_params=pltpu.CompilerParams(
            dimension_semantics=("parallel",)),
    )(x_flat, wt, b2)

    # (N, Cout, H*W) -> (N, Cout, H, W): contiguous reshape, no HBM transpose.
    return out_flat.reshape(n, cout, h, w)


# ---------------------------------------------------------------------------
# Pure-JAX reference (lax.conv) for correctness checking.
# ---------------------------------------------------------------------------
def simple_block_ref(x_nchw, weight_hwio, bias):
    y = lax.conv_general_dilated(
        x_nchw.astype(jnp.float32), weight_hwio.astype(jnp.float32),
        window_strides=(1, 1), padding=[(1, 1), (1, 1)],
        dimension_numbers=("NCHW", "HWIO", "NCHW"))
    y = y + bias[None, :, None, None]
    return jnp.maximum(y, 0.0)


if __name__ == "__main__":
    key = jax.random.PRNGKey(0)
    k_x, k_w, k_b = jax.random.split(key, 3)

    N, C, H, W = 2, 24, 16, 16                       # SimpleBlock: 24 -> 24
    x = jax.random.normal(k_x, (N, C, H, W), jnp.float32)
    weight = 0.1 * jax.random.normal(k_w, (3, 3, C, C), jnp.float32)  # HWIO
    bias = 0.1 * jax.random.normal(k_b, (C,), jnp.float32)

    out = jax.block_until_ready(simple_block_forward(x, weight, bias))
    ref = jax.block_until_ready(simple_block_ref(x, weight, bias))

    assert out.shape == (N, C, H, W), out.shape
    max_err = float(jnp.max(jnp.abs(out - ref)))
    # bf16 MXU operands with f32 accumulation (per review) -> ~1e-2 tolerance.
    assert max_err < 5e-2, max_err

    print("KERNEL_OK")
</pallas_src>

<mosaic_0001>
module attributes {stable_mosaic.version = 11 : i64} {
  func.func @_conv3x3_relu_kernel(%arg0: i32, %arg1: memref<1x24x256xf32, #tpu.memory_space<vmem>>, %arg2: memref<9x24x24xbf16, #tpu.memory_space<vmem>>, %arg3: memref<24x1xf32, #tpu.memory_space<vmem>>, %arg4: memref<1x24x256xf32, #tpu.memory_space<vmem>>) attributes {dimension_semantics = [#tpu.dimension_semantics<parallel>], iteration_bounds = array<i64: 2>, scalar_prefetch = 0 : i64, scratch_operands = 0 : i64, tpu.core_type = #tpu.core_type<tc>, window_params = [{transform_indices = @transform_0, window_bounds = array<i64: 1, 24, 256>}, {pipeline_mode = #tpu.pipeline_mode<synchronous>, transform_indices = @transform_1, window_bounds = array<i64: 9, 24, 24>}, {pipeline_mode = #tpu.pipeline_mode<synchronous>, transform_indices = @transform_2, window_bounds = array<i64: 24, 1>}, {transform_indices = @transform_3, window_bounds = array<i64: 1, 24, 256>}]} {
    %c0 = arith.constant 0 : index
    %c0_0 = arith.constant 0 : index
    %c0_1 = arith.constant 0 : index
    %0 = vector.load %arg1[%c0, %c0_0, %c0_1] : memref<1x24x256xf32, #tpu.memory_space<vmem>>, vector<1x24x256xf32>
    %1 = vector.shape_cast %0 : vector<1x24x256xf32> to vector<24x256xf32>
    %2 = arith.truncf %1 : vector<24x256xf32> to vector<24x256xbf16>
    %cst = arith.constant 0.000000e+00 : bf16
    %3 = vector.broadcast %cst : bf16 to vector<24x17xbf16>
    %4 = tpu.concatenate %3, %2, %3 in 1 : vector<24x17xbf16>, vector<24x256xbf16>, vector<24x17xbf16> -> vector<24x290xbf16>
    %5 = tpu.iota {dimensions = array<i32: 1>} : vector<24x256xi32>
    %c16_i32 = arith.constant 16 : i32
    %c0_i32 = arith.constant 0 : i32
    %6 = arith.cmpi eq, %c16_i32, %c0_i32 : i32
    %c1_i32 = arith.constant 1 : i32
    %7 = arith.select %6, %c1_i32, %c16_i32 : i32
    %8 = vector.broadcast %7 : i32 to vector<24x256xi32>
    %9 = arith.remsi %5, %8 : vector<24x256xi32>
    %c0_i32_2 = arith.constant 0 : i32
    %10 = vector.broadcast %c0_i32_2 : i32 to vector<24x256xi32>
    %11 = arith.cmpi ne, %9, %10 : vector<24x256xi32>
    %c0_i32_3 = arith.constant 0 : i32
    %12 = vector.broadcast %c0_i32_3 : i32 to vector<24x256xi32>
    %13 = arith.cmpi slt, %9, %12 : vector<24x256xi32>
    %c0_i32_4 = arith.constant 0 : i32
    %14 = arith.cmpi slt, %7, %c0_i32_4 : i32
    %15 = vector.broadcast %14 : i1 to vector<24x256xi1>
    %16 = vector.broadcast %15 : vector<24x256xi1> to vector<24x256xi1>
    %17 = arith.xori %13, %16 : vector<24x256xi1>
    %18 = arith.andi %17, %11 : vector<24x256xi1>
    %19 = vector.broadcast %7 : i32 to vector<24x256xi32>
    %20 = arith.addi %9, %19 : vector<24x256xi32>
    %21 = arith.select %18, %20, %9 : vector<24x256xi1>, vector<24x256xi32>
    %c0_i32_5 = arith.constant 0 : i32
    %22 = vector.broadcast %c0_i32_5 : i32 to vector<24x256xi32>
    %23 = arith.cmpi ne, %21, %22 : vector<24x256xi32>
    %c15_i32 = arith.constant 15 : i32
    %24 = vector.broadcast %c15_i32 : i32 to vector<24x256xi32>
    %25 = arith.cmpi ne, %21, %24 : vector<24x256xi32>
    %c0_6 = arith.constant 0 : index
    %c0_7 = arith.constant 0 : index
    %c0_8 = arith.constant 0 : index
    %26 = vector.load %arg2[%c0_6, %c0_7, %c0_8] : memref<9x24x24xbf16, #tpu.memory_space<vmem>>, vector<9x24x24xbf16>
    %cst_9 = arith.constant 0.000000e+00 : f32
    %27 = vector.broadcast %cst_9 : f32 to vector<24x256xf32>
    %28 = vector.extract_strided_slice %4 {offsets = [0, 0], sizes = [24, 256], strides = [1, 1]} : vector<24x290xbf16> to vector<24x256xbf16>
    %c0_i32_10 = arith.constant 0 : i32
    %29 = arith.sitofp %c0_i32_10 : i32 to bf16
    %30 = vector.broadcast %29 : bf16 to vector<24x256xbf16>
    %31 = arith.select %23, %28, %30 : vector<24x256xi1>, vector<24x256xbf16>
    %32 = vector.extract_strided_slice %26 {offsets = [0, 0, 0], sizes = [1, 24, 24], strides = [1, 1, 1]} : vector<9x24x24xbf16> to vector<1x24x24xbf16>
    %33 = vector.shape_cast %32 : vector<1x24x24xbf16> to vector<24x24xbf16>
    %cst_11 = arith.constant dense<0.000000e+00> : vector<24x256xf32>
    %34 = tpu.matmul %33, %31, %cst_11 {dimension_numbers = #tpu.dot_dimension_numbers<[1], [0], [0], [1], [0, 0, 1, 1], [], []>} : vector<24x24xbf16>, vector<24x256xbf16>, vector<24x256xf32> -> vector<24x256xf32>
    %35 = arith.addf %27, %34 : vector<24x256xf32>
    %36 = vector.extract_strided_slice %4 {offsets = [0, 1], sizes = [24, 256], strides = [1, 1]} : vector<24x290xbf16> to vector<24x256xbf16>
    %37 = vector.extract_strided_slice %26 {offsets = [1, 0, 0], sizes = [1, 24, 24], strides = [1, 1, 1]} : vector<9x24x24xbf16> to vector<1x24x24xbf16>
    %38 = vector.shape_cast %37 : vector<1x24x24xbf16> to vector<24x24xbf16>
    %cst_12 = arith.constant dense<0.000000e+00> : vector<24x256xf32>
    %39 = tpu.matmul %38, %36, %cst_12 {dimension_numbers = #tpu.dot_dimension_numbers<[1], [0], [0], [1], [0, 0, 1, 1], [], []>} : vector<24x24xbf16>, vector<24x256xbf16>, vector<24x256xf32> -> vector<24x256xf32>
    %40 = arith.addf %35, %39 : vector<24x256xf32>
    %41 = vector.extract_strided_slice %4 {offsets = [0, 2], sizes = [24, 256], strides = [1, 1]} : vector<24x290xbf16> to vector<24x256xbf16>
    %c0_i32_13 = arith.constant 0 : i32
    %42 = arith.sitofp %c0_i32_13 : i32 to bf16
    %43 = vector.broadcast %42 : bf16 to vector<24x256xbf16>
    %44 = arith.select %25, %41, %43 : vector<24x256xi1>, vector<24x256xbf16>
    %45 = vector.extract_strided_slice %26 {offsets = [2, 0, 0], sizes = [1, 24, 24], strides = [1, 1, 1]} : vector<9x24x24xbf16> to vector<1x24x24xbf16>
    %46 = vector.shape_cast %45 : vector<1x24x24xbf16> to vector<24x24xbf16>
    %cst_14 = arith.constant dense<0.000000e+00> : vector<24x256xf32>
    %47 = tpu.matmul %46, %44, %cst_14 {dimension_numbers = #tpu.dot_dimension_numbers<[1], [0], [0], [1], [0, 0, 1, 1], [], []>} : vector<24x24xbf16>, vector<24x256xbf16>, vector<24x256xf32> -> vector<24x256xf32>
    %48 = arith.addf %40, %47 : vector<24x256xf32>
    %49 = vector.extract_strided_slice %4 {offsets = [0, 16], sizes = [24, 256], strides = [1, 1]} : vector<24x290xbf16> to vector<24x256xbf16>
    %c0_i32_15 = arith.constant 0 : i32
    %50 = arith.sitofp %c0_i32_15 : i32 to bf16
    %51 = vector.broadcast %50 : bf16 to vector<24x256xbf16>
    %52 = arith.select %23, %49, %51 : vector<24x256xi1>, vector<24x256xbf16>
    %53 = vector.extract_strided_slice %26 {offsets = [3, 0, 0], sizes = [1, 24, 24], strides = [1, 1, 1]} : vector<9x24x24xbf16> to vector<1x24x24xbf16>
    %54 = vector.shape_cast %53 : vector<1x24x24xbf16> to vector<24x24xbf16>
    %cst_16 = arith.constant dense<0.000000e+00> : vector<24x256xf32>
    %55 = tpu.matmul %54, %52, %cst_16 {dimension_numbers = #tpu.dot_dimension_numbers<[1], [0], [0], [1], [0, 0, 1, 1], [], []>} : vector<24x24xbf16>, vector<24x256xbf16>, vector<24x256xf32> -> vector<24x256xf32>
    %56 = arith.addf %48, %55 : vector<24x256xf32>
    %57 = vector.extract_strided_slice %4 {offsets = [0, 17], sizes = [24, 256], strides = [1, 1]} : vector<24x290xbf16> to vector<24x256xbf16>
    %58 = vector.extract_strided_slice %26 {offsets = [4, 0, 0], sizes = [1, 24, 24], strides = [1, 1, 1]} : vector<9x24x24xbf16> to vector<1x24x24xbf16>
    %59 = vector.shape_cast %58 : vector<1x24x24xbf16> to vector<24x24xbf16>
    %cst_17 = arith.constant dense<0.000000e+00> : vector<24x256xf32>
    %60 = tpu.matmul %59, %57, %cst_17 {dimension_numbers = #tpu.dot_dimension_numbers<[1], [0], [0], [1], [0, 0, 1, 1], [], []>} : vector<24x24xbf16>, vector<24x256xbf16>, vector<24x256xf32> -> vector<24x256xf32>
    %61 = arith.addf %56, %60 : vector<24x256xf32>
    %62 = vector.extract_strided_slice %4 {offsets = [0, 18], sizes = [24, 256], strides = [1, 1]} : vector<24x290xbf16> to vector<24x256xbf16>
    %c0_i32_18 = arith.constant 0 : i32
    %63 = arith.sitofp %c0_i32_18 : i32 to bf16
    %64 = vector.broadcast %63 : bf16 to vector<24x256xbf16>
    %65 = arith.select %25, %62, %64 : vector<24x256xi1>, vector<24x256xbf16>
    %66 = vector.extract_strided_slice %26 {offsets = [5, 0, 0], sizes = [1, 24, 24], strides = [1, 1, 1]} : vector<9x24x24xbf16> to vector<1x24x24xbf16>
    %67 = vector.shape_cast %66 : vector<1x24x24xbf16> to vector<24x24xbf16>
    %cst_19 = arith.constant dense<0.000000e+00> : vector<24x256xf32>
    %68 = tpu.matmul %67, %65, %cst_19 {dimension_numbers = #tpu.dot_dimension_numbers<[1], [0], [0], [1], [0, 0, 1, 1], [], []>} : vector<24x24xbf16>, vector<24x256xbf16>, vector<24x256xf32> -> vector<24x256xf32>
    %69 = arith.addf %61, %68 : vector<24x256xf32>
    %70 = vector.extract_strided_slice %4 {offsets = [0, 32], sizes = [24, 256], strides = [1, 1]} : vector<24x290xbf16> to vector<24x256xbf16>
    %c0_i32_20 = arith.constant 0 : i32
    %71 = arith.sitofp %c0_i32_20 : i32 to bf16
    %72 = vector.broadcast %71 : bf16 to vector<24x256xbf16>
    %73 = arith.select %23, %70, %72 : vector<24x256xi1>, vector<24x256xbf16>
    %74 = vector.extract_strided_slice %26 {offsets = [6, 0, 0], sizes = [1, 24, 24], strides = [1, 1, 1]} : vector<9x24x24xbf16> to vector<1x24x24xbf16>
    %75 = vector.shape_cast %74 : vector<1x24x24xbf16> to vector<24x24xbf16>
    %cst_21 = arith.constant dense<0.000000e+00> : vector<24x256xf32>
    %76 = tpu.matmul %75, %73, %cst_21 {dimension_numbers = #tpu.dot_dimension_numbers<[1], [0], [0], [1], [0, 0, 1, 1], [], []>} : vector<24x24xbf16>, vector<24x256xbf16>, vector<24x256xf32> -> vector<24x256xf32>
    %77 = arith.addf %69, %76 : vector<24x256xf32>
    %78 = vector.extract_strided_slice %4 {offsets = [0, 33], sizes = [24, 256], strides = [1, 1]} : vector<24x290xbf16> to vector<24x256xbf16>
    %79 = vector.extract_strided_slice %26 {offsets = [7, 0, 0], sizes = [1, 24, 24], strides = [1, 1, 1]} : vector<9x24x24xbf16> to vector<1x24x24xbf16>
    %80 = vector.shape_cast %79 : vector<1x24x24xbf16> to vector<24x24xbf16>
    %cst_22 = arith.constant dense<0.000000e+00> : vector<24x256xf32>
    %81 = tpu.matmul %80, %78, %cst_22 {dimension_numbers = #tpu.dot_dimension_numbers<[1], [0], [0], [1], [0, 0, 1, 1], [], []>} : vector<24x24xbf16>, vector<24x256xbf16>, vector<24x256xf32> -> vector<24x256xf32>
    %82 = arith.addf %77, %81 : vector<24x256xf32>
    %83 = vector.extract_strided_slice %4 {offsets = [0, 34], sizes = [24, 256], strides = [1, 1]} : vector<24x290xbf16> to vector<24x256xbf16>
    %c0_i32_23 = arith.constant 0 : i32
    %84 = arith.sitofp %c0_i32_23 : i32 to bf16
    %85 = vector.broadcast %84 : bf16 to vector<24x256xbf16>
    %86 = arith.select %25, %83, %85 : vector<24x256xi1>, vector<24x256xbf16>
    %87 = vector.extract_strided_slice %26 {offsets = [8, 0, 0], sizes = [1, 24, 24], strides = [1, 1, 1]} : vector<9x24x24xbf16> to vector<1x24x24xbf16>
    %88 = vector.shape_cast %87 : vector<1x24x24xbf16> to vector<24x24xbf16>
    %cst_24 = arith.constant dense<0.000000e+00> : vector<24x256xf32>
    %89 = tpu.matmul %88, %86, %cst_24 {dimension_numbers = #tpu.dot_dimension_numbers<[1], [0], [0], [1], [0, 0, 1, 1], [], []>} : vector<24x24xbf16>, vector<24x256xbf16>, vector<24x256xf32> -> vector<24x256xf32>
    %90 = arith.addf %82, %89 : vector<24x256xf32>
    %c0_25 = arith.constant 0 : index
    %c0_26 = arith.constant 0 : index
    %91 = vector.load %arg3[%c0_25, %c0_26] : memref<24x1xf32, #tpu.memory_space<vmem>>, vector<24x1xf32>
    %92 = vector.broadcast %91 : vector<24x1xf32> to vector<24x256xf32>
    %93 = arith.addf %90, %92 : vector<24x256xf32>
    %cst_27 = arith.constant 0.000000e+00 : f32
    %94 = vector.broadcast %cst_27 : f32 to vector<24x256xf32>
    %95 = arith.maximumf %93, %94 : vector<24x256xf32>
    %c0_28 = arith.constant 0 : index
    %c0_29 = arith.constant 0 : index
    %c0_30 = arith.constant 0 : index
    %96 = vector.load %arg4[%c0_28, %c0_29, %c0_30] : memref<1x24x256xf32, #tpu.memory_space<vmem>>, vector<1x24x256xf32>
    %97 = vector.shape_cast %96 : vector<1x24x256xf32> to vector<24x256xf32>
    %98 = vector.shape_cast %95 : vector<24x256xf32> to vector<1x24x256xf32>
    tpu.vector_store %arg4[%c0_28, %c0_29, %c0_30], %98 {strides = array<i32>} : memref<1x24x256xf32, #tpu.memory_space<vmem>>, vector<1x24x256xf32>,
    return
  }
  func.func @transform_0(%arg0: i32) -> (i32, i32, i32) {
    %c0_i32 = arith.constant 0 : i32
    %c0_i32_0 = arith.constant 0 : i32
    %c0_i32_1 = arith.constant 0 : i32
    return %arg0, %c0_i32, %c0_i32_0 : i32, i32, i32
  }
  func.func @transform_1(%arg0: i32) -> (i32, i32, i32) {
    %c0_i32 = arith.constant 0 : i32
    %c0_i32_0 = arith.constant 0 : i32
    %c0_i32_1 = arith.constant 0 : i32
    %c0_i32_2 = arith.constant 0 : i32
    return %c0_i32, %c0_i32_0, %c0_i32_1 : i32, i32, i32
  }
  func.func @transform_2(%arg0: i32) -> (i32, i32) {
    %c0_i32 = arith.constant 0 : i32
    %c0_i32_0 = arith.constant 0 : i32
    %c0_i32_1 = arith.constant 0 : i32
    return %c0_i32, %c0_i32_0 : i32, i32
  }
  func.func @transform_3(%arg0: i32) -> (i32, i32, i32) {
    %c0_i32 = arith.constant 0 : i32
    %c0_i32_0 = arith.constant 0 : i32
    %c0_i32_1 = arith.constant 0 : i32
    return %arg0, %c0_i32, %c0_i32_0 : i32, i32, i32
  }
}

</mosaic_0001>

<llo_original>
// kernel: tpu_custom_call.1
$region0: #{tpu_custom_call.1}
  #allocation0 [shape = 'u32[]', space=smem, size = 0x4, offset = 0x4, fixed_abs, tag = 'smem constant byte address 0x4 - core index']
  #allocation1 [shape = 'u32[144,128]{1,0:T(1,128)}', space=vmem, size = 0x12000, scoped, tag = 'internal scratch']
  %s0 = inlined_call_operand.hbm [shape: f32[2,24,256], index: 0, kind: input, shape index: {}]
  %s1 = inlined_call_operand.hbm [shape: bf16[9,24,24], index: 1, kind: input, shape index: {}]
  %s2 = inlined_call_operand.vmem [shape: f32[24,1], index: 2, kind: input, shape index: {}]
  %s3 = inlined_call_operand.hbm [shape: f32[2,24,256], index: 3, kind: output, shape index: {}]
  %s4 = sld [smem:[#allocation0]]
  $region53: #{tpu_custom_call.1} parent=0
    _
  %s6 = ssub.s32 1, %s4
  %s7 = scalar_select 0, %s6, %s4
  $region1: #{tpu_custom_call.1} parent=0
    #allocation2 [shape = 'u8[49152]{0}', space=vmem, size = 0xc000, scoped, tag = 'input window, operand 0']
    #allocation3 [shape = 's32[2]{0}', space=sflag, size = 0x8, scoped, tag = 'scoped memory for tpu_custom_call.1']
    #allocation4 [shape = 's32[2]{0}', space=sflag, size = 0x8, scoped, tag = 'scoped memory for tpu_custom_call.1']
    #allocation5 [shape = 'u8[55296]{0}', space=vmem, size = 0xd800, scoped, tag = 'input window, operand 1, single buffered']
    #allocation6 [shape = 's32[1]{0}', space=sflag, size = 0x4, scoped, tag = 'scoped memory for tpu_custom_call.1']
    #allocation7 [shape = 'u8[49152]{0}', space=vmem, size = 0xc000, scoped, tag = 'output window, operand 0']
    %8 = vsyncpa [#allocation3], 0
    %s9 = scalar_lea.sflag [#allocation3], 1
    %10 = vsyncpa %s9, 0
    %11 = vsyncpa [#allocation6], 0
    %12 = vsyncpa [#allocation4], 0
    %s13 = scalar_lea.sflag [#allocation4], 1
    %14 = vsyncpa %s13, 0
    loop: start=0, step=1, limit=4
    $region2: #{tpu_custom_call.1} parent=1 // loop_pre_header
      _
    $region3: #{tpu_custom_call.1} parent=1 // loop_header
      %s16 = sphi 0, %s20
      %p17 = scmp.ge.s32.totalorder %s16, 4
      %s26 = sphi 0, %s28
      %s29 = sphi 0, %s26
      %s30 = sphi 0, %s29
      %s46 = sphi 0, %s30
      %s50 = sphi 0, %s50
      %s52 = sphi 0, %s50
      %s53 = sphi 0, %s52
      %s67 = sphi 0, %s53
      %s71 = sphi 0, %s71
      %s73 = sphi 0, %s71
      %s74 = sphi 0, %s73
      %s88 = sphi 0, %s74
      %s94 = sphi 0, %s96
      %s97 = sphi 0, %s94
      %s98 = sphi 0, %s97
      %s114 = sphi 0, %s98
    $region4: #{tpu_custom_call.1} parent=1 // loop_header_branch
      %19 = sbr.rel (%p17) target = $region8
    $region5: #{tpu_custom_call.1} parent=1 // loop_body
      %s21 = ssub.s32 %s16, 1
      %s22 = ssub.s32 %s16, 2
      %s23 = sadd.s32 %s16, 1
      %s24 = ssub.s32 %s16, %s23
      %p25 = scmp.eq.s32.totalorder %s24, 0
      %s27 = sadd.s32 %s26, 1
      %s28 = scalar_select %p25, %s26, %s27
      %p31 = pneg %p25
      %p32 = scmp.eq.s32.totalorder %s16, 1
      %p33 = por %p31, %p32
      %p34 = scmp.ne.s32.totalorder %s26, %s29
      %p35 = scmp.eq.s32.totalorder %s16, 0
      %p36 = por %p34, %p35
      %p37 = scmp.ne.s32.totalorder %s26, %s29
      %p38 = scmp.eq.s32.totalorder %s21, 1
      %p39 = por %p37, %p38
      %p40 = scmp.ne.s32.totalorder %s29, %s30
      %p41 = scmp.eq.s32.totalorder %s21, 0
      %p42 = por %p40, %p41
      %p43 = scmp.ne.s32.totalorder %s29, %s30
      %p44 = scmp.eq.s32.totalorder %s22, 1
      %p45 = por %p43, %p44
      %p47 = scmp.ne.s32.totalorder %s30, %s46
      %p48 = scmp.eq.s32.totalorder %s22, 0
      %p49 = por %p47, %p48
      %s51 = sadd.s32 %s50, 1
      %p54 = scmp.eq.s32.totalorder %s16, 1
      %p55 = scmp.ne.s32.totalorder %s50, %s52
      %p56 = scmp.eq.s32.totalorder %s16, 0
      %p57 = por %p55, %p56
      %p58 = scmp.ne.s32.totalorder %s50, %s52
      %p59 = scmp.eq.s32.totalorder %s21, 1
      %p60 = por %p58, %p59
      %p61 = scmp.ne.s32.totalorder %s52, %s53
      %p62 = scmp.eq.s32.totalorder %s21, 0
      %p63 = por %p61, %p62
      %p64 = scmp.ne.s32.totalorder %s52, %s53
      %p65 = scmp.eq.s32.totalorder %s22, 1
      %p66 = por %p64, %p65
      %p68 = scmp.ne.s32.totalorder %s53, %s67
      %p69 = scmp.eq.s32.totalorder %s22, 0
      %p70 = por %p68, %p69
      %s72 = sadd.s32 %s71, 1
      %p75 = scmp.eq.s32.totalorder %s16, 1
      %p76 = scmp.ne.s32.totalorder %s71, %s73
      %p77 = scmp.eq.s32.totalorder %s16, 0
      %p78 = por %p76, %p77
      %p79 = scmp.ne.s32.totalorder %s71, %s73
      %p80 = scmp.eq.s32.totalorder %s21, 1
      %p81 = por %p79, %p80
      %p82 = scmp.ne.s32.totalorder %s73, %s74
      %p83 = scmp.eq.s32.totalorder %s21, 0
      %p84 = por %p82, %p83
      %p85 = scmp.ne.s32.totalorder %s73, %s74
      %p86 = scmp.eq.s32.totalorder %s22, 1
      %p87 = por %p85, %p86
      %p89 = scmp.ne.s32.totalorder %s74, %s88
      %p90 = scmp.eq.s32.totalorder %s22, 0
      %p91 = por %p89, %p90
      %s92 = ssub.s32 %s16, %s23
      %p93 = scmp.eq.s32.totalorder %s92, 0
      %s95 = sadd.s32 %s94, 1
      %s96 = scalar_select %p93, %s94, %s95
      %p99 = pneg %p93
      %p100 = scmp.eq.s32.totalorder %s16, 1
      %p101 = por %p99, %p100
      %p102 = scmp.ne.s32.totalorder %s94, %s97
      %p103 = scmp.eq.s32.totalorder %s16, 0
      %p104 = por %p102, %p103
      %p105 = scmp.ne.s32.totalorder %s94, %s97
      %p106 = scmp.eq.s32.totalorder %s21, 1
      %p107 = por %p105, %p106
      %p108 = scmp.ne.s32.totalorder %s97, %s98
      %p109 = scmp.eq.s32.totalorder %s21, 0
      %p110 = por %p108, %p109
      %p111 = scmp.ne.s32.totalorder %s97, %s98
      %p112 = scmp.eq.s32.totalorder %s22, 1
      %p113 = por %p111, %p112
      %p115 = scmp.ne.s32.totalorder %s98, %s114
      %p116 = scmp.eq.s32.totalorder %s22, 0
      %p117 = por %p115, %p116
      %p118 = scmp.le.s32.totalorder 1, %s16
      %p119 = scmp.lt.s32.totalorder %s16, 3
      %p120 = pnand %p118, %p119
      %p121 = pneg %p120
      // Predicated region
      $region9: #{tpu_custom_call.1} parent=5 // pred_check
        _
      $region10: #{tpu_custom_call.1} parent=5 // pred_check_branch
        %123 = sbr.rel (%p120) target = $region12
      $region11: #{tpu_custom_call.1} parent=5 // pred_region
        %s124 = ssub.s32 %s16, 1
        // Predicated region
        $region13: #{tpu_custom_call.1} parent=11 // pred_check
          %p125 = pneg %p63
        $region14: #{tpu_custom_call.1} parent=11 // pred_check_branch
          %127 = sbr.rel (%p125) target = $region16
        $region15: #{tpu_custom_call.1} parent=11 // pred_region
          %s129 = ssub.s32 1728, 1728
          %130 = vsyncadd [#allocation6], %s129
          %s131 = sshll.u32 [#allocation5], 4
          %s132 = int_to_ptr.vmem [resolvable:$true] %s131
          %137 = dma.hbm_to_vmem [thread:$0]  %s1, 1728, %s132, [#allocation6], 64, 64, 4
        $region16: #{tpu_custom_call.1} parent=11 // pred_fallthru
          _
        // Predicated region
        $region17: #{tpu_custom_call.1} parent=11 // pred_check
          %p138 = pneg %p84
        $region18: #{tpu_custom_call.1} parent=11 // pred_check_branch
          %140 = sbr.rel (%p138) target = $region20
        $region19: #{tpu_custom_call.1} parent=11 // pred_region
          _
        $region20: #{tpu_custom_call.1} parent=11 // pred_fallthru
          _
      $region12: #{tpu_custom_call.1} parent=5 // pred_fallthru
        _
      %p141 = scmp.lt.s32.totalorder %s16, 2
      // Predicated region
      $region21: #{tpu_custom_call.1} parent=5 // pred_check
        %p142 = pneg %p141
      $region22: #{tpu_custom_call.1} parent=5 // pred_check_branch
        %144 = sbr.rel (%p142) target = $region24
      $region23: #{tpu_custom_call.1} parent=5 // pred_region
        // Predicated region
        $region25: #{tpu_custom_call.1} parent=23 // pred_check
          %p145 = pneg %p36
        $region26: #{tpu_custom_call.1} parent=23 // pred_check_branch
          %147 = sbr.rel (%p145) target = $region28
        $region27: #{tpu_custom_call.1} parent=23 // pred_region
          %s148 = sand.u32 %s26, 1
          %s149 = scalar_lea.sflag [#allocation3], %s148
          %s150 = sand.u32 %s26, 1
          %s151 = smul.addr %s150, 48
          %s152 = scalar_lea.vmem [#allocation2], %s151
          %s154 = ssub.s32 768, 768
          %155 = vsyncadd %s149, %s154
          %s156 = smul.addr %s16, 6
          %s157 = smul.addr %s156, 128
          %s158 = scalar_lea.hbm %s0, %s157
          %s159 = sshll.u32 %s152, 4
          %s160 = int_to_ptr.vmem [resolvable:$true] %s159
          %165 = dma.hbm_to_vmem [thread:$0]  %s158, 768, %s160, %s149, 256, 256, 16
        $region28: #{tpu_custom_call.1} parent=23 // pred_fallthru
          _
      $region24: #{tpu_custom_call.1} parent=5 // pred_fallthru
        _
      %p166 = scmp.le.s32.totalorder 1, %s16
      %p167 = scmp.lt.s32.totalorder %s16, 3
      %p168 = pnand %p166, %p167
      %p169 = pneg %p168
      // Predicated region
      $region29: #{tpu_custom_call.1} parent=5 // pred_check
        _
      $region30: #{tpu_custom_call.1} parent=5 // pred_check_branch
        %171 = sbr.rel (%p168) target = $region32
      $region31: #{tpu_custom_call.1} parent=5 // pred_region
        %s172 = ssub.s32 %s16, 1
        %s173 = sand.u32 %s29, 1
        %s174 = scalar_lea.sflag [#allocation3], %s173
        %s175 = sand.u32 %s29, 1
        %s176 = smul.addr %s175, 48
        %s177 = scalar_lea.vmem [#allocation2], %s176
        // Predicated region
        $region33: #{tpu_custom_call.1} parent=31 // pred_check
          %p178 = pneg %p42
        $region34: #{tpu_custom_call.1} parent=31 // pred_check_branch
          %180 = sbr.rel (%p178) target = $region36
        $region35: #{tpu_custom_call.1} parent=31 // pred_region
          %181 = dma.done %s174, 768
        $region36: #{tpu_custom_call.1} parent=31 // pred_fallthru
          _
        // Predicated region
        $region37: #{tpu_custom_call.1} parent=31 // pred_check
          %p182 = pneg %p63
        $region38: #{tpu_custom_call.1} parent=31 // pred_check_branch
          %184 = sbr.rel (%p182) target = $region40
        $region39: #{tpu_custom_call.1} parent=31 // pred_region
          %185 = dma.done [#allocation6], 1728
        $region40: #{tpu_custom_call.1} parent=31 // pred_fallthru
          _
        %s186 = sand.u32 %s29, 1
        %s187 = scalar_lea.sflag [#allocation3], %s186
        %s188 = sand.u32 %s29, 1
        %s189 = smul.addr %s188, 48
        %s190 = scalar_lea.vmem [#allocation2], %s189
        %p191 = pneg %p42
        %p192 = pneg %p39
        %p193 = pneg %p63
        %p194 = pneg %p60
        %p195 = pneg %p84
        %p196 = pneg %p81
        %p197 = pneg %p110
        %p198 = pneg %p107
        %s199 = sand.u32 %s97, 1
        %s200 = scalar_lea.sflag [#allocation4], %s199
        %s201 = sand.u32 %s97, 1
        %s202 = smul.addr %s201, 48
        %s203 = scalar_lea.vmem [#allocation7], %s202
        %v207 = vld [vmem:[%s177] sm:$0xff]
        %v208 = vld [vmem:[%s177 + $0x8] sm:$0xff]
        %v209 = vld [vmem:[%s177 + $0x10] sm:$0xff]
        %v210 = vld [vmem:[%s177 + $0x18] sm:$0xff]
        %v211 = vld [vmem:[%s177 + $0x20] sm:$0xff]
        %v212 = vld [vmem:[%s177 + $0x28] sm:$0xff]
        %v213 = vpack.c.bf16 %v209, %v207
        %v214 = vpack.c.bf16 %v210, %v208
        %v215 = vpack.c.bf16 %v211, %v211
        %v216 = vpack.c.bf16 %v212, %v212
        %221 = vrot.lane.b32.xlu0 %v213, 17
        %v222 = vpop.permute.xlu0 %221
        %223 = vrot.lane.b32.xlu0 %v214, 17
        %v224 = vpop.permute.xlu0 %223
        %225 = vrot.lane.b32.xlu0 %v215, 17
        %v226 = vpop.permute.xlu0 %225
        %227 = vrot.lane.b32.xlu0 %v216, 17
        %v228 = vpop.permute.xlu0 %227
        %vm229 = vcmask 138240
        %v230 = vsel %vm229, %v222, %v224
        %v231 = vsel %vm229, %v226, %v228
        %vm234 = vcmask 138240
        %v237 = vsel %vm234, 0, %v222
        %v240 = vsel %vm234, 0, %v226
        %v243 = vsel %vm234, %v224, 0
        %v246 = vsel %vm234, %v228, 0
        %v248 = vlaneseq
        %v249 = vand.u32 %v248, 127
        %v250 = vadd.s32 %v249, 128
        %vm251 = vcmp.lt.s32.totalorder %v249, 0
        %v252 = vsub.s32 0, %v249
        %v253 = vsel %vm251, %v252, %v249
        %v254 = vshrl.u32 %v253, 4
        %v255 = vand.u32 %v253, 15
        %v256 = vsub.s32 0, %v255
        %v257 = vsel %vm251, %v256, %v255
        %vm258 = vcmp.lt.s32.totalorder %v250, 0
        %v259 = vsub.s32 0, %v250
        %v260 = vsel %vm258, %v259, %v250
        %v261 = vshrl.u32 %v260, 4
        %v262 = vand.u32 %v260, 15
        %v263 = vsub.s32 0, %v262
        %v264 = vsel %vm258, %v263, %v262
        %vm265 = vcmp.ne.s32.totalorder %v257, 0
        %vm266 = vcmp.ne.s32.totalorder %v264, 0
        %vm267 = vcmp.lt.s32.totalorder %v257, 0
        %vm268 = vcmp.lt.s32.totalorder %v264, 0
        %vm269 = vmand %vm267, %vm265
        %vm270 = vmand %vm268, %vm266
        %v271 = vadd.s32 %v257, 16
        %v272 = vadd.s32 %v264, 16
        %v273 = vsel %vm269, %v271, %v257
        %v274 = vsel %vm270, %v272, %v264
        %vm275 = vcmp.ne.s32.totalorder %v273, 0
        %vm276 = vcmp.ne.s32.totalorder %v274, 0
        %vm277 = vcmp.ne.s32.totalorder %v273, 15
        %vm278 = vcmp.ne.s32.totalorder %v274, 15
        %v279 = vld [vmem:[#allocation5] sm:$0xf]
        %v280 = vld [vmem:[#allocation5 + $0x4] sm:$0xf]
        %v281 = vld [vmem:[#allocation5 + $0x8] sm:$0xf]
        %v282 = vld [vmem:[#allocation5 + $0xc] sm:$0xf]
        %v283 = vld [vmem:[#allocation5 + $0x10] sm:$0xf]
        %v284 = vld [vmem:[#allocation5 + $0x14] sm:$0xf]
        %v285 = vld [vmem:[#allocation5 + $0x18] sm:$0xf]
        %v286 = vld [vmem:[#allocation5 + $0x1c] sm:$0xf]
        %v287 = vld [vmem:[#allocation5 + $0x20] sm:$0xf]
        %v288 = vld [vmem:[#allocation5 + $0x24] sm:$0xf]
        %v289 = vld [vmem:[#allocation5 + $0x28] sm:$0xf]
        %v290 = vld [vmem:[#allocation5 + $0x2c] sm:$0xf]
        %v291 = vld [vmem:[#allocation5 + $0x30] sm:$0xf]
        %v292 = vld [vmem:[#allocation5 + $0x34] sm:$0xf]
        %v293 = vld [vmem:[#allocation5 + $0x38] sm:$0xf]
        %v294 = vld [vmem:[#allocation5 + $0x3c] sm:$0xf]
        %v295 = vld [vmem:[#allocation5 + $0x40] sm:$0xf]
        %v296 = vld [vmem:[#allocation5 + $0x44] sm:$0xf]
        %v297 = vld [vmem:[#allocation5 + $0x48] sm:$0xf]
        %v298 = vld [vmem:[#allocation5 + $0x4c] sm:$0xf]
        %v299 = vld [vmem:[#allocation5 + $0x50] sm:$0xf]
        %v300 = vld [vmem:[#allocation5 + $0x54] sm:$0xf]
        %v301 = vld [vmem:[#allocation5 + $0x58] sm:$0xf]
        %v302 = vld [vmem:[#allocation5 + $0x5c] sm:$0xf]
        %v303 = vld [vmem:[#allocation5 + $0x60] sm:$0xf]
        %v304 = vld [vmem:[#allocation5 + $0x64] sm:$0xf]
        %v305 = vld [vmem:[#allocation5 + $0x68] sm:$0xf]
        %vm306 = vmpackc.low %vm276, %vm275
        %v307 = vsel %vm306, 65537, 0
        %v308 = vlaneseq
        %v309 = vshrl.u32 %v308, 7
        %v310 = vsub.s32 0, %v309
        %v311 = vrot.slane %v307, %v310
        %v312 = vlaneseq
        %v313 = vshrl.u32 %v312, 7
        %v314 = vsub.s32 4, %v313
        %v315 = vrot.slane %v307, %v314
        %vm316 = vcmp.ne.s16.totalorder %v311, 0
        %vm317 = vcmp.ne.s16.totalorder %v315, 0
        %v318 = vsel %vm316, %v237, 0
        %v319 = vsel %vm317, %v230, 0
        %v320 = vsel %vm316, %v240, 0
        %v321 = vsel %vm317, %v231, 0
        %v325 = vunpack.c.l.b16 %v282
        %v326 = vunpack.c.l.b16 %v283
        %v327 = vunpack.c.l.b16 %v284
        %v328 = vpack.c.b16 %v326, %v325
        %v329 = vpack.c.b16 %v327, %v327
        %334 = vrot.lane.b32.xlu0 %v237, 127
        %v335 = vpop.permute.xlu0 %334
        %336 = vrot.lane.b32.xlu0 %v230, 127
        %v337 = vpop.permute.xlu0 %336
        %338 = vrot.lane.b32.xlu0 %v243, 127
        %v339 = vpop.permute.xlu0 %338
        %340 = vrot.lane.b32.xlu0 %v240, 127
        %v341 = vpop.permute.xlu0 %340
        %342 = vrot.lane.b32.xlu0 %v231, 127
        %v343 = vpop.permute.xlu0 %342
        %344 = vrot.lane.b32.xlu0 %v246, 127
        %v345 = vpop.permute.xlu0 %344
        %vm346 = vcmask 1039360
        %v347 = vsel %vm346, %v335, %v337
        %v348 = vsel %vm346, %v337, %v339
        %v349 = vsel %vm346, %v341, %v343
        %v350 = vsel %vm346, %v343, %v345
        %vm353 = vcmask 195584
        %v355 = vsel %vm353, %v328, 0
        %v358 = vsel %vm353, %v329, 0
        %vm360 = vcmask 1043456
        %v362 = vsel %vm360, %v349, 0
        %v365 = vsel %vm360, %v350, 0
        %367 = vmatprep.subr.bf16.mxu0 %v348
        %368 = vmatpush1.bf16.msra.mxu0 %v347
        %369 = vmatprep.subr.bf16.mxu0 %v365
        %370 = vmatpush1.bf16.msra.mxu0 %v362
        %371 = vmatprep.subr.bf16.mxu0 0
        %372 = vmatpush1.bf16.msra.mxu0 0
        %373 = vmatprep.subr.bf16.mxu0 0
        %374 = vmatpush1.bf16.msra.mxu0 0
        %375 = vmatprep.subr.bf16.mxu0 0
        %376 = vmatpush1.bf16.msra.mxu0 0
        %377 = vmatprep.subr.bf16.mxu0 0
        %378 = vmatpush1.bf16.msra.mxu0 0
        %379 = vmatprep.subr.bf16.mxu0 0
        %380 = vmatpush1.bf16.msra.mxu0 0
        %381 = vmatprep.subr.bf16.mxu0 0
        %382 = vmatpush1.bf16.msra.mxu0 0
        %383 = vmatprep.subr.bf16.mxu0 0
        %384 = vmatpush1.bf16.msra.mxu0 0
        %385 = vmatprep.subr.bf16.mxu0 0
        %386 = vmatpush1.bf16.msra.mxu0 0
        %387 = vmatprep.subr.bf16.mxu0 0
        %388 = vmatpush1.bf16.msra.mxu0 0
        %389 = vmatprep.subr.bf16.mxu0 0
        %390 = vmatpush1.bf16.msra.mxu0 0
        %391 = vmatprep.subr.bf16.mxu0 0
        %392 = vmatpush1.bf16.msra.mxu0 0
        %393 = vmatprep.subr.bf16.mxu0 0
        %394 = vmatpush1.bf16.msra.mxu0 0
        %395 = vmatprep.subr.bf16.mxu0 0
        %396 = vmatpush1.bf16.msra.mxu0 0
        %397 = vmatprep.subr.bf16.mxu0 0
        %398 = vmatpush1.bf16.msra.mxu0 0
        %399 = vmatprep.mubr.bf16.mxu0 0
        %400 = vmatmul.mubr.bf16.gmra.mrb[0].mxu0 %v355
        %v401 = vpop.f32.mrb[0].mxu0
        %v402 = vadd.f32 0.0, %v401
        %v403 = vpop.f32.mrb[0].mxu0
        %v404 = vadd.f32 0.0, %v403
        %v405 = vpop.f32.mrb[0].mxu0
        %v406 = vadd.f32 0.0, %v405
        %v407 = vpop.f32.mrb[0].mxu0
        %v408 = vadd.f32 0.0, %v407
        %409 = vmatprep.mubr.bf16.mxu0 0
        %410 = vmatmul.mubr.bf16.gmra.mrb[0].mxu0 %v358
        %v411 = vpop.f32.mrb[0].mxu0
        %v412 = vadd.f32 0.0, %v411
        %v413 = vpop.f32.mrb[0].mxu0
        %v414 = vadd.f32 0.0, %v413
        %v415 = vpop.f32.mrb[0].mxu0
        %v416 = vpop.f32.mrb[0].mxu0
        %417 = vdwg.mxu0
        %v421 = vunpack.c.l.b16 %v279
        %v422 = vunpack.c.l.b16 %v280
        %v423 = vunpack.c.l.b16 %v281
        %v424 = vpack.c.b16 %v422, %v421
        %v425 = vpack.c.b16 %v423, %v423
        %v427 = vsel %vm353, %v424, 0
        %v430 = vsel %vm353, %v425, 0
        %v433 = vsel %vm360, %v320, 0
        %v436 = vsel %vm360, %v321, 0
        %438 = vmatprep.subr.bf16.mxu0 %v319
        %439 = vmatpush1.bf16.msra.mxu0 %v318
        %440 = vmatprep.subr.bf16.mxu0 %v436
        %441 = vmatpush1.bf16.msra.mxu0 %v433
        %442 = vmatprep.subr.bf16.mxu0 0
        %443 = vmatpush1.bf16.msra.mxu0 0
        %444 = vmatprep.subr.bf16.mxu0 0
        %445 = vmatpush1.bf16.msra.mxu0 0
        %446 = vmatprep.subr.bf16.mxu0 0
        %447 = vmatpush1.bf16.msra.mxu0 0
        %448 = vmatprep.subr.bf16.mxu0 0
        %449 = vmatpush1.bf16.msra.mxu0 0
        %450 = vmatprep.subr.bf16.mxu0 0
        %451 = vmatpush1.bf16.msra.mxu0 0
        %452 = vmatprep.subr.bf16.mxu0 0
        %453 = vmatpush1.bf16.msra.mxu0 0
        %454 = vmatprep.subr.bf16.mxu0 0
        %455 = vmatpush1.bf16.msra.mxu0 0
        %456 = vmatprep.subr.bf16.mxu0 0
        %457 = vmatpush1.bf16.msra.mxu0 0
        %458 = vmatprep.subr.bf16.mxu0 0
        %459 = vmatpush1.bf16.msra.mxu0 0
        %460 = vmatprep.subr.bf16.mxu0 0
        %461 = vmatpush1.bf16.msra.mxu0 0
        %462 = vmatprep.subr.bf16.mxu0 0
        %463 = vmatpush1.bf16.msra.mxu0 0
        %464 = vmatprep.subr.bf16.mxu0 0
        %465 = vmatpush1.bf16.msra.mxu0 0
        %466 = vmatprep.subr.bf16.mxu0 0
        %467 = vmatpush1.bf16.msra.mxu0 0
        %468 = vmatprep.subr.bf16.mxu0 0
        %469 = vmatpush1.bf16.msra.mxu0 0
        %470 = vmatprep.mubr.bf16.mxu0 0
        %471 = vmatmul.mubr.bf16.gmra.mrb[0].mxu0 %v427
        %v472 = vpop.f32.mrb[0].mxu0
        %v473 = vadd.f32 %v402, %v472
        %v474 = vpop.f32.mrb[0].mxu0
        %v475 = vadd.f32 %v404, %v474
        %v476 = vpop.f32.mrb[0].mxu0
        %v477 = vadd.f32 %v406, %v476
        %v478 = vpop.f32.mrb[0].mxu0
        %v479 = vadd.f32 %v408, %v478
        %480 = vmatprep.mubr.bf16.mxu0 0
        %481 = vmatmul.mubr.bf16.gmra.mrb[0].mxu0 %v430
        %v482 = vpop.f32.mrb[0].mxu0
        %v483 = vadd.f32 %v412, %v482
        %v484 = vpop.f32.mrb[0].mxu0
        %v485 = vadd.f32 %v414, %v484
        %v486 = vpop.f32.mrb[0].mxu0
        %v487 = vpop.f32.mrb[0].mxu0
        %488 = vdwg.mxu0
        %vm489 = vmpackc.low %vm278, %vm277
        %v490 = vsel %vm489, 65537, 0
        %v491 = vlaneseq
        %v492 = vshrl.u32 %v491, 7
        %v493 = vsub.s32 0, %v492
        %v494 = vrot.slane %v490, %v493
        %v495 = vlaneseq
        %v496 = vshrl.u32 %v495, 7
        %v497 = vsub.s32 4, %v496
        %v498 = vrot.slane %v490, %v497
        %499 = vrot.lane.b32.xlu0 %v494, 2
        %v500 = vpop.permute.xlu0 %499
        %501 = vrot.lane.b32.xlu0 %v498, 2
        %v502 = vpop.permute.xlu0 %501
        %vm503 = vcmask 15360
        %v504 = vsel %vm503, %v500, %v502
        %vm505 = vcmp.ne.s16.totalorder %v500, 0
        %vm506 = vcmp.ne.s16.totalorder %v504, 0
        %vm507 = vcmp.ne.s16.totalorder %v502, 0
        %v508 = vsel %vm505, %v237, 0
        %v509 = vsel %vm506, %v230, 0
        %v510 = vsel %vm507, %v243, 0
        %v511 = vsel %vm505, %v240, 0
        %v512 = vsel %vm506, %v231, 0
        %v513 = vsel %vm507, %v246, 0
        %v517 = vunpack.c.l.b16 %v285
        %v518 = vunpack.c.l.b16 %v286
        %v519 = vunpack.c.l.b16 %v287
        %v520 = vpack.c.b16 %v518, %v517
        %v521 = vpack.c.b16 %v519, %v519
        %528 = vrot.lane.b32.xlu0 %v508, 126
        %v529 = vpop.permute.xlu0 %528
        %530 = vrot.lane.b32.xlu0 %v509, 126
        %v531 = vpop.permute.xlu0 %530
        %532 = vrot.lane.b32.xlu0 %v510, 126
        %v533 = vpop.permute.xlu0 %532
        %534 = vrot.lane.b32.xlu0 %v511, 126
        %v535 = vpop.permute.xlu0 %534
        %536 = vrot.lane.b32.xlu0 %v512, 126
        %v537 = vpop.permute.xlu0 %536
        %538 = vrot.lane.b32.xlu0 %v513, 126
        %v539 = vpop.permute.xlu0 %538
        %vm540 = vcmask 1031168
        %v541 = vsel %vm540, %v529, %v531
        %v542 = vsel %vm540, %v531, %v533
        %v543 = vsel %vm540, %v535, %v537
        %v544 = vsel %vm540, %v537, %v539
        %v548 = vsel %vm353, %v520, 0
        %v551 = vsel %vm353, %v521, 0
        %v554 = vsel %vm360, %v543, 0
        %v557 = vsel %vm360, %v544, 0
        %559 = vmatprep.subr.bf16.mxu0 %v542
        %560 = vmatpush1.bf16.msra.mxu0 %v541
        %561 = vmatprep.subr.bf16.mxu0 %v557
        %562 = vmatpush1.bf16.msra.mxu0 %v554
        %563 = vmatprep.subr.bf16.mxu0 0
        %564 = vmatpush1.bf16.msra.mxu0 0
        %565 = vmatprep.subr.bf16.mxu0 0
        %566 = vmatpush1.bf16.msra.mxu0 0
        %567 = vmatprep.subr.bf16.mxu0 0
        %568 = vmatpush1.bf16.msra.mxu0 0
        %569 = vmatprep.subr.bf16.mxu0 0
        %570 = vmatpush1.bf16.msra.mxu0 0
        %571 = vmatprep.subr.bf16.mxu0 0
        %572 = vmatpush1.bf16.msra.mxu0 0
        %573 = vmatprep.subr.bf16.mxu0 0
        %574 = vmatpush1.bf16.msra.mxu0 0
        %575 = vmatprep.subr.bf16.mxu0 0
        %576 = vmatpush1.bf16.msra.mxu0 0
        %577 = vmatprep.subr.bf16.mxu0 0
        %578 = vmatpush1.bf16.msra.mxu0 0
        %579 = vmatprep.subr.bf16.mxu0 0
        %580 = vmatpush1.bf16.msra.mxu0 0
        %581 = vmatprep.subr.bf16.mxu0 0
        %582 = vmatpush1.bf16.msra.mxu0 0
        %583 = vmatprep.subr.bf16.mxu0 0
        %584 = vmatpush1.bf16.msra.mxu0 0
        %585 = vmatprep.subr.bf16.mxu0 0
        %586 = vmatpush1.bf16.msra.mxu0 0
        %587 = vmatprep.subr.bf16.mxu0 0
        %588 = vmatpush1.bf16.msra.mxu0 0
        %589 = vmatprep.subr.bf16.mxu0 0
        %590 = vmatpush1.bf16.msra.mxu0 0
        %591 = vmatprep.mubr.bf16.mxu0 0
        %592 = vmatmul.mubr.bf16.gmra.mrb[0].mxu0 %v548
        %v593 = vpop.f32.mrb[0].mxu0
        %v594 = vadd.f32 0.0, %v593
        %v595 = vpop.f32.mrb[0].mxu0
        %v596 = vadd.f32 0.0, %v595
        %v597 = vpop.f32.mrb[0].mxu0
        %v598 = vadd.f32 0.0, %v597
        %v599 = vpop.f32.mrb[0].mxu0
        %v600 = vadd.f32 0.0, %v599
        %601 = vmatprep.mubr.bf16.mxu0 0
        %602 = vmatmul.mubr.bf16.gmra.mrb[0].mxu0 %v551
        %v603 = vpop.f32.mrb[0].mxu0
        %v604 = vadd.f32 0.0, %v603
        %v605 = vpop.f32.mrb[0].mxu0
        %v606 = vadd.f32 0.0, %v605
        %v607 = vpop.f32.mrb[0].mxu0
        %v608 = vpop.f32.mrb[0].mxu0
        %609 = vdwg.mxu0
        %v610 = vadd.f32 %v473, %v594
        %v611 = vadd.f32 %v475, %v596
        %v612 = vadd.f32 %v477, %v598
        %v613 = vadd.f32 %v479, %v600
        %v614 = vadd.f32 %v483, %v604
        %v615 = vadd.f32 %v485, %v606
        %616 = vrot.lane.b32.xlu0 %v311, 16
        %v617 = vpop.permute.xlu0 %616
        %618 = vrot.lane.b32.xlu0 %v315, 16
        %v619 = vpop.permute.xlu0 %618
        %vm620 = vcmask 130048
        %v621 = vsel %vm620, %v617, %v619
        %vm622 = vcmp.ne.s16.totalorder %v617, 0
        %vm623 = vcmp.ne.s16.totalorder %v621, 0
        %vm624 = vcmp.ne.s16.totalorder %v619, 0
        %v625 = vsel %vm622, %v237, 0
        %v626 = vsel %vm623, %v230, 0
        %v627 = vsel %vm624, %v243, 0
        %v628 = vsel %vm622, %v240, 0
        %v629 = vsel %vm623, %v231, 0
        %v630 = vsel %vm624, %v246, 0
        %v634 = vunpack.c.l.b16 %v288
        %v635 = vunpack.c.l.b16 %v289
        %v636 = vunpack.c.l.b16 %v290
        %v637 = vpack.c.b16 %v635, %v634
        %v638 = vpack.c.b16 %v636, %v636
        %645 = vrot.lane.b32.xlu0 %v625, 112
        %v646 = vpop.permute.xlu0 %645
        %647 = vrot.lane.b32.xlu0 %v626, 112
        %v648 = vpop.permute.xlu0 %647
        %649 = vrot.lane.b32.xlu0 %v627, 112
        %v650 = vpop.permute.xlu0 %649
        %651 = vrot.lane.b32.xlu0 %v628, 112
        %v652 = vpop.permute.xlu0 %651
        %653 = vrot.lane.b32.xlu0 %v629, 112
        %v654 = vpop.permute.xlu0 %653
        %655 = vrot.lane.b32.xlu0 %v630, 112
        %v656 = vpop.permute.xlu0 %655
        %vm657 = vcmask 916480
        %v658 = vsel %vm657, %v646, %v648
        %v659 = vsel %vm657, %v648, %v650
        %v660 = vsel %vm657, %v652, %v654
        %v661 = vsel %vm657, %v654, %v656
        %v665 = vsel %vm353, %v637, 0
        %v668 = vsel %vm353, %v638, 0
        %v671 = vsel %vm360, %v660, 0
        %v674 = vsel %vm360, %v661, 0
        %676 = vmatprep.subr.bf16.mxu0 %v659
        %677 = vmatpush1.bf16.msra.mxu0 %v658
        %678 = vmatprep.subr.bf16.mxu0 %v674
        %679 = vmatpush1.bf16.msra.mxu0 %v671
        %680 = vmatprep.subr.bf16.mxu0 0
        %681 = vmatpush1.bf16.msra.mxu0 0
        %682 = vmatprep.subr.bf16.mxu0 0
        %683 = vmatpush1.bf16.msra.mxu0 0
        %684 = vmatprep.subr.bf16.mxu0 0
        %685 = vmatpush1.bf16.msra.mxu0 0
        %686 = vmatprep.subr.bf16.mxu0 0
        %687 = vmatpush1.bf16.msra.mxu0 0
        %688 = vmatprep.subr.bf16.mxu0 0
        %689 = vmatpush1.bf16.msra.mxu0 0
        %690 = vmatprep.subr.bf16.mxu0 0
        %691 = vmatpush1.bf16.msra.mxu0 0
        %692 = vmatprep.subr.bf16.mxu0 0
        %693 = vmatpush1.bf16.msra.mxu0 0
        %694 = vmatprep.subr.bf16.mxu0 0
        %695 = vmatpush1.bf16.msra.mxu0 0
        %696 = vmatprep.subr.bf16.mxu0 0
        %697 = vmatpush1.bf16.msra.mxu0 0
        %698 = vmatprep.subr.bf16.mxu0 0
        %699 = vmatpush1.bf16.msra.mxu0 0
        %700 = vmatprep.subr.bf16.mxu0 0
        %701 = vmatpush1.bf16.msra.mxu0 0
        %702 = vmatprep.subr.bf16.mxu0 0
        %703 = vmatpush1.bf16.msra.mxu0 0
        %704 = vmatprep.subr.bf16.mxu0 0
        %705 = vmatpush1.bf16.msra.mxu0 0
        %706 = vmatprep.subr.bf16.mxu0 0
        %707 = vmatpush1.bf16.msra.mxu0 0
        %708 = vmatprep.mubr.bf16.mxu0 0
        %709 = vmatmul.mubr.bf16.gmra.mrb[0].mxu0 %v665
        %v710 = vpop.f32.mrb[0].mxu0
        %v711 = vadd.f32 0.0, %v710
        %v712 = vpop.f32.mrb[0].mxu0
        %v713 = vadd.f32 0.0, %v712
        %v714 = vpop.f32.mrb[0].mxu0
        %v715 = vadd.f32 0.0, %v714
        %v716 = vpop.f32.mrb[0].mxu0
        %v717 = vadd.f32 0.0, %v716
        %718 = vmatprep.mubr.bf16.mxu0 0
        %719 = vmatmul.mubr.bf16.gmra.mrb[0].mxu0 %v668
        %v720 = vpop.f32.mrb[0].mxu0
        %v721 = vadd.f32 0.0, %v720
        %v722 = vpop.f32.mrb[0].mxu0
        %v723 = vadd.f32 0.0, %v722
        %v724 = vpop.f32.mrb[0].mxu0
        %v725 = vpop.f32.mrb[0].mxu0
        %726 = vdwg.mxu0
        %v727 = vadd.f32 %v610, %v711
        %v728 = vadd.f32 %v611, %v713
        %v729 = vadd.f32 %v612, %v715
        %v730 = vadd.f32 %v613, %v717
        %v731 = vadd.f32 %v614, %v721
        %v732 = vadd.f32 %v615, %v723
        %v736 = vunpack.c.l.b16 %v291
        %v737 = vunpack.c.l.b16 %v292
        %v738 = vunpack.c.l.b16 %v293
        %v739 = vpack.c.b16 %v737, %v736
        %v740 = vpack.c.b16 %v738, %v738
        %741 = vrot.lane.b32.xlu0 %v237, 111
        %v742 = vpop.permute.xlu0 %741
        %743 = vrot.lane.b32.xlu0 %v230, 111
        %v744 = vpop.permute.xlu0 %743
        %745 = vrot.lane.b32.xlu0 %v243, 111
        %v746 = vpop.permute.xlu0 %745
        %747 = vrot.lane.b32.xlu0 %v240, 111
        %v748 = vpop.permute.xlu0 %747
        %749 = vrot.lane.b32.xlu0 %v231, 111
        %v750 = vpop.permute.xlu0 %749
        %751 = vrot.lane.b32.xlu0 %v246, 111
        %v752 = vpop.permute.xlu0 %751
        %vm753 = vcmask 908288
        %v754 = vsel %vm753, %v742, %v744
        %v755 = vsel %vm753, %v744, %v746
        %v756 = vsel %vm753, %v748, %v750
        %v757 = vsel %vm753, %v750, %v752
        %v761 = vsel %vm353, %v739, 0
        %v764 = vsel %vm353, %v740, 0
        %v767 = vsel %vm360, %v756, 0
        %v770 = vsel %vm360, %v757, 0
        %772 = vmatprep.subr.bf16.mxu0 %v755
        %773 = vmatpush1.bf16.msra.mxu0 %v754
        %774 = vmatprep.subr.bf16.mxu0 %v770
        %775 = vmatpush1.bf16.msra.mxu0 %v767
        %776 = vmatprep.subr.bf16.mxu0 0
        %777 = vmatpush1.bf16.msra.mxu0 0
        %778 = vmatprep.subr.bf16.mxu0 0
        %779 = vmatpush1.bf16.msra.mxu0 0
        %780 = vmatprep.subr.bf16.mxu0 0
        %781 = vmatpush1.bf16.msra.mxu0 0
        %782 = vmatprep.subr.bf16.mxu0 0
        %783 = vmatpush1.bf16.msra.mxu0 0
        %784 = vmatprep.subr.bf16.mxu0 0
        %785 = vmatpush1.bf16.msra.mxu0 0
        %786 = vmatprep.subr.bf16.mxu0 0
        %787 = vmatpush1.bf16.msra.mxu0 0
        %788 = vmatprep.subr.bf16.mxu0 0
        %789 = vmatpush1.bf16.msra.mxu0 0
        %790 = vmatprep.subr.bf16.mxu0 0
        %791 = vmatpush1.bf16.msra.mxu0 0
        %792 = vmatprep.subr.bf16.mxu0 0
        %793 = vmatpush1.bf16.msra.mxu0 0
        %794 = vmatprep.subr.bf16.mxu0 0
        %795 = vmatpush1.bf16.msra.mxu0 0
        %796 = vmatprep.subr.bf16.mxu0 0
        %797 = vmatpush1.bf16.msra.mxu0 0
        %798 = vmatprep.subr.bf16.mxu0 0
        %799 = vmatpush1.bf16.msra.mxu0 0
        %800 = vmatprep.subr.bf16.mxu0 0
        %801 = vmatpush1.bf16.msra.mxu0 0
        %802 = vmatprep.subr.bf16.mxu0 0
        %803 = vmatpush1.bf16.msra.mxu0 0
        %804 = vmatprep.mubr.bf16.mxu0 0
        %805 = vmatmul.mubr.bf16.gmra.mrb[0].mxu0 %v761
        %v806 = vpop.f32.mrb[0].mxu0
        %v807 = vadd.f32 0.0, %v806
        %v808 = vpop.f32.mrb[0].mxu0
        %v809 = vadd.f32 0.0, %v808
        %v810 = vpop.f32.mrb[0].mxu0
        %v811 = vadd.f32 0.0, %v810
        %v812 = vpop.f32.mrb[0].mxu0
        %v813 = vadd.f32 0.0, %v812
        %814 = vmatprep.mubr.bf16.mxu0 0
        %815 = vmatmul.mubr.bf16.gmra.mrb[0].mxu0 %v764
        %v816 = vpop.f32.mrb[0].mxu0
        %v817 = vadd.f32 0.0, %v816
        %v818 = vpop.f32.mrb[0].mxu0
        %v819 = vadd.f32 0.0, %v818
        %v820 = vpop.f32.mrb[0].mxu0
        %v821 = vpop.f32.mrb[0].mxu0
        %822 = vdwg.mxu0
        %v823 = vadd.f32 %v727, %v807
        %v824 = vadd.f32 %v728, %v809
        %v825 = vadd.f32 %v729, %v811
        %v826 = vadd.f32 %v730, %v813
        %v827 = vadd.f32 %v731, %v817
        %v828 = vadd.f32 %v732, %v819
        %829 = vrot.lane.b32.xlu0 %v494, 18
        %v830 = vpop.permute.xlu0 %829
        %831 = vrot.lane.b32.xlu0 %v498, 18
        %v832 = vpop.permute.xlu0 %831
        %vm833 = vcmask 146432
        %v834 = vsel %vm833, %v830, %v832
        %vm835 = vcmp.ne.s16.totalorder %v830, 0
        %vm836 = vcmp.ne.s16.totalorder %v834, 0
        %vm837 = vcmp.ne.s16.totalorder %v832, 0
        %v838 = vsel %vm835, %v237, 0
        %v839 = vsel %vm836, %v230, 0
        %v840 = vsel %vm837, %v243, 0
        %v841 = vsel %vm835, %v240, 0
        %v842 = vsel %vm836, %v231, 0
        %v843 = vsel %vm837, %v246, 0
        %v847 = vunpack.c.l.b16 %v294
        %v848 = vunpack.c.l.b16 %v295
        %v849 = vunpack.c.l.b16 %v296
        %v850 = vpack.c.b16 %v848, %v847
        %v851 = vpack.c.b16 %v849, %v849
        %858 = vrot.lane.b32.xlu0 %v838, 110
        %v859 = vpop.permute.xlu0 %858
        %860 = vrot.lane.b32.xlu0 %v839, 110
        %v861 = vpop.permute.xlu0 %860
        %862 = vrot.lane.b32.xlu0 %v840, 110
        %v863 = vpop.permute.xlu0 %862
        %864 = vrot.lane.b32.xlu0 %v841, 110
        %v865 = vpop.permute.xlu0 %864
        %866 = vrot.lane.b32.xlu0 %v842, 110
        %v867 = vpop.permute.xlu0 %866
        %868 = vrot.lane.b32.xlu0 %v843, 110
        %v869 = vpop.permute.xlu0 %868
        %vm870 = vcmask 900096
        %v871 = vsel %vm870, %v859, %v861
        %v872 = vsel %vm870, %v861, %v863
        %v873 = vsel %vm870, %v865, %v867
        %v874 = vsel %vm870, %v867, %v869
        %v878 = vsel %vm353, %v850, 0
        %v881 = vsel %vm353, %v851, 0
        %v884 = vsel %vm360, %v873, 0
        %v887 = vsel %vm360, %v874, 0
        %889 = vmatprep.subr.bf16.mxu0 %v872
        %890 = vmatpush1.bf16.msra.mxu0 %v871
        %891 = vmatprep.subr.bf16.mxu0 %v887
        %892 = vmatpush1.bf16.msra.mxu0 %v884
        %893 = vmatprep.subr.bf16.mxu0 0
        %894 = vmatpush1.bf16.msra.mxu0 0
        %895 = vmatprep.subr.bf16.mxu0 0
        %896 = vmatpush1.bf16.msra.mxu0 0
        %897 = vmatprep.subr.bf16.mxu0 0
        %898 = vmatpush1.bf16.msra.mxu0 0
        %899 = vmatprep.subr.bf16.mxu0 0
        %900 = vmatpush1.bf16.msra.mxu0 0
        %901 = vmatprep.subr.bf16.mxu0 0
        %902 = vmatpush1.bf16.msra.mxu0 0
        %903 = vmatprep.subr.bf16.mxu0 0
        %904 = vmatpush1.bf16.msra.mxu0 0
        %905 = vmatprep.subr.bf16.mxu0 0
        %906 = vmatpush1.bf16.msra.mxu0 0
        %907 = vmatprep.subr.bf16.mxu0 0
        %908 = vmatpush1.bf16.msra.mxu0 0
        %909 = vmatprep.subr.bf16.mxu0 0
        %910 = vmatpush1.bf16.msra.mxu0 0
        %911 = vmatprep.subr.bf16.mxu0 0
        %912 = vmatpush1.bf16.msra.mxu0 0
        %913 = vmatprep.subr.bf16.mxu0 0
        %914 = vmatpush1.bf16.msra.mxu0 0
        %915 = vmatprep.subr.bf16.mxu0 0
        %916 = vmatpush1.bf16.msra.mxu0 0
        %917 = vmatprep.subr.bf16.mxu0 0
        %918 = vmatpush1.bf16.msra.mxu0 0
        %919 = vmatprep.subr.bf16.mxu0 0
        %920 = vmatpush1.bf16.msra.mxu0 0
        %921 = vmatprep.mubr.bf16.mxu0 0
        %922 = vmatmul.mubr.bf16.gmra.mrb[0].mxu0 %v878
        %v923 = vpop.f32.mrb[0].mxu0
        %v924 = vadd.f32 0.0, %v923
        %v925 = vpop.f32.mrb[0].mxu0
        %v926 = vadd.f32 0.0, %v925
        %v927 = vpop.f32.mrb[0].mxu0
        %v928 = vadd.f32 0.0, %v927
        %v929 = vpop.f32.mrb[0].mxu0
        %v930 = vadd.f32 0.0, %v929
        %931 = vmatprep.mubr.bf16.mxu0 0
        %932 = vmatmul.mubr.bf16.gmra.mrb[0].mxu0 %v881
        %v933 = vpop.f32.mrb[0].mxu0
        %v934 = vadd.f32 0.0, %v933
        %v935 = vpop.f32.mrb[0].mxu0
        %v936 = vadd.f32 0.0, %v935
        %v937 = vpop.f32.mrb[0].mxu0
        %v938 = vpop.f32.mrb[0].mxu0
        %939 = vdwg.mxu0
        %v940 = vadd.f32 %v823, %v924
        %v941 = vadd.f32 %v824, %v926
        %v942 = vadd.f32 %v825, %v928
        %v943 = vadd.f32 %v826, %v930
        %v944 = vadd.f32 %v827, %v934
        %v945 = vadd.f32 %v828, %v936
        %946 = vrot.lane.b32.xlu0 %v311, 32
        %v947 = vpop.permute.xlu0 %946
        %948 = vrot.lane.b32.xlu0 %v315, 32
        %v949 = vpop.permute.xlu0 %948
        %vm950 = vcmask 261120
        %v951 = vsel %vm950, %v947, %v949
        %vm952 = vcmp.ne.s16.totalorder %v947, 0
        %vm953 = vcmp.ne.s16.totalorder %v951, 0
        %vm954 = vcmp.ne.s16.totalorder %v949, 0
        %v955 = vsel %vm952, %v237, 0
        %v956 = vsel %vm953, %v230, 0
        %v957 = vsel %vm954, %v243, 0
        %v958 = vsel %vm952, %v240, 0
        %v959 = vsel %vm953, %v231, 0
        %v960 = vsel %vm954, %v246, 0
        %v964 = vunpack.c.l.b16 %v297
        %v965 = vunpack.c.l.b16 %v298
        %v966 = vunpack.c.l.b16 %v299
        %v967 = vpack.c.b16 %v965, %v964
        %v968 = vpack.c.b16 %v966, %v966
        %975 = vrot.lane.b32.xlu0 %v955, 96
        %v976 = vpop.permute.xlu0 %975
        %977 = vrot.lane.b32.xlu0 %v956, 96
        %v978 = vpop.permute.xlu0 %977
        %979 = vrot.lane.b32.xlu0 %v957, 96
        %v980 = vpop.permute.xlu0 %979
        %981 = vrot.lane.b32.xlu0 %v958, 96
        %v982 = vpop.permute.xlu0 %981
        %983 = vrot.lane.b32.xlu0 %v959, 96
        %v984 = vpop.permute.xlu0 %983
        %985 = vrot.lane.b32.xlu0 %v960, 96
        %v986 = vpop.permute.xlu0 %985
        %vm987 = vcmask 785408
        %v988 = vsel %vm987, %v976, %v978
        %v989 = vsel %vm987, %v978, %v980
        %v990 = vsel %vm987, %v982, %v984
        %v991 = vsel %vm987, %v984, %v986
        %v995 = vsel %vm353, %v967, 0
        %v998 = vsel %vm353, %v968, 0
        %v1001 = vsel %vm360, %v990, 0
        %v1004 = vsel %vm360, %v991, 0
        %1006 = vmatprep.subr.bf16.mxu0 %v989
        %1007 = vmatpush1.bf16.msra.mxu0 %v988
        %1008 = vmatprep.subr.bf16.mxu0 %v1004
        %1009 = vmatpush1.bf16.msra.mxu0 %v1001
        %1010 = vmatprep.subr.bf16.mxu0 0
        %1011 = vmatpush1.bf16.msra.mxu0 0
        %1012 = vmatprep.subr.bf16.mxu0 0
        %1013 = vmatpush1.bf16.msra.mxu0 0
        %1014 = vmatprep.subr.bf16.mxu0 0
        %1015 = vmatpush1.bf16.msra.mxu0 0
        %1016 = vmatprep.subr.bf16.mxu0 0
        %1017 = vmatpush1.bf16.msra.mxu0 0
        %1018 = vmatprep.subr.bf16.mxu0 0
        %1019 = vmatpush1.bf16.msra.mxu0 0
        %1020 = vmatprep.subr.bf16.mxu0 0
        %1021 = vmatpush1.bf16.msra.mxu0 0
        %1022 = vmatprep.subr.bf16.mxu0 0
        %1023 = vmatpush1.bf16.msra.mxu0 0
        %1024 = vmatprep.subr.bf16.mxu0 0
        %1025 = vmatpush1.bf16.msra.mxu0 0
        %1026 = vmatprep.subr.bf16.mxu0 0
        %1027 = vmatpush1.bf16.msra.mxu0 0
        %1028 = vmatprep.subr.bf16.mxu0 0
        %1029 = vmatpush1.bf16.msra.mxu0 0
        %1030 = vmatprep.subr.bf16.mxu0 0
        %1031 = vmatpush1.bf16.msra.mxu0 0
        %1032 = vmatprep.subr.bf16.mxu0 0
        %1033 = vmatpush1.bf16.msra.mxu0 0
        %1034 = vmatprep.subr.bf16.mxu0 0
        %1035 = vmatpush1.bf16.msra.mxu0 0
        %1036 = vmatprep.subr.bf16.mxu0 0
        %1037 = vmatpush1.bf16.msra.mxu0 0
        %1038 = vmatprep.mubr.bf16.mxu0 0
        %1039 = vmatmul.mubr.bf16.gmra.mrb[0].mxu0 %v995
        %v1040 = vpop.f32.mrb[0].mxu0
        %v1041 = vadd.f32 0.0, %v1040
        %v1042 = vpop.f32.mrb[0].mxu0
        %v1043 = vadd.f32 0.0, %v1042
        %v1044 = vpop.f32.mrb[0].mxu0
        %v1045 = vadd.f32 0.0, %v1044
        %v1046 = vpop.f32.mrb[0].mxu0
        %v1047 = vadd.f32 0.0, %v1046
        %1048 = vmatprep.mubr.bf16.mxu0 0
        %1049 = vmatmul.mubr.bf16.gmra.mrb[0].mxu0 %v998
        %v1050 = vpop.f32.mrb[0].mxu0
        %v1051 = vadd.f32 0.0, %v1050
        %v1052 = vpop.f32.mrb[0].mxu0
        %v1053 = vadd.f32 0.0, %v1052
        %v1054 = vpop.f32.mrb[0].mxu0
        %v1055 = vpop.f32.mrb[0].mxu0
        %1056 = vdwg.mxu0
        %v1057 = vadd.f32 %v940, %v1041
        %v1058 = vadd.f32 %v941, %v1043
        %v1059 = vadd.f32 %v942, %v1045
        %v1060 = vadd.f32 %v943, %v1047
        %v1061 = vadd.f32 %v944, %v1051
        %v1062 = vadd.f32 %v945, %v1053
        %v1066 = vunpack.c.l.b16 %v300
        %v1067 = vunpack.c.l.b16 %v301
        %v1068 = vunpack.c.l.b16 %v302
        %v1069 = vpack.c.b16 %v1067, %v1066
        %v1070 = vpack.c.b16 %v1068, %v1068
        %1071 = vrot.lane.b32.xlu0 %v237, 95
        %v1072 = vpop.permute.xlu0 %1071
        %1073 = vrot.lane.b32.xlu0 %v230, 95
        %v1074 = vpop.permute.xlu0 %1073
        %1075 = vrot.lane.b32.xlu0 %v243, 95
        %v1076 = vpop.permute.xlu0 %1075
        %1077 = vrot.lane.b32.xlu0 %v240, 95
        %v1078 = vpop.permute.xlu0 %1077
        %1079 = vrot.lane.b32.xlu0 %v231, 95
        %v1080 = vpop.permute.xlu0 %1079
        %1081 = vrot.lane.b32.xlu0 %v246, 95
        %v1082 = vpop.permute.xlu0 %1081
        %vm1083 = vcmask 777216
        %v1084 = vsel %vm1083, %v1072, %v1074
        %v1085 = vsel %vm1083, %v1074, %v1076
        %v1086 = vsel %vm1083, %v1078, %v1080
        %v1087 = vsel %vm1083, %v1080, %v1082
        %v1091 = vsel %vm353, %v1069, 0
        %v1094 = vsel %vm353, %v1070, 0
        %v1097 = vsel %vm360, %v1086, 0
        %v1100 = vsel %vm360, %v1087, 0
        %1102 = vmatprep.subr.bf16.mxu0 %v1085
        %1103 = vmatpush1.bf16.msra.mxu0 %v1084
        %1104 = vmatprep.subr.bf16.mxu0 %v1100
        %1105 = vmatpush1.bf16.msra.mxu0 %v1097
        %1106 = vmatprep.subr.bf16.mxu0 0
        %1107 = vmatpush1.bf16.msra.mxu0 0
        %1108 = vmatprep.subr.bf16.mxu0 0
        %1109 = vmatpush1.bf16.msra.mxu0 0
        %1110 = vmatprep.subr.bf16.mxu0 0
        %1111 = vmatpush1.bf16.msra.mxu0 0
        %1112 = vmatprep.subr.bf16.mxu0 0
        %1113 = vmatpush1.bf16.msra.mxu0 0
        %1114 = vmatprep.subr.bf16.mxu0 0
        %1115 = vmatpush1.bf16.msra.mxu0 0
        %1116 = vmatprep.subr.bf16.mxu0 0
        %1117 = vmatpush1.bf16.msra.mxu0 0
        %1118 = vmatprep.subr.bf16.mxu0 0
        %1119 = vmatpush1.bf16.msra.mxu0 0
        %1120 = vmatprep.subr.bf16.mxu0 0
        %1121 = vmatpush1.bf16.msra.mxu0 0
        %1122 = vmatprep.subr.bf16.mxu0 0
        %1123 = vmatpush1.bf16.msra.mxu0 0
        %1124 = vmatprep.subr.bf16.mxu0 0
        %1125 = vmatpush1.bf16.msra.mxu0 0
        %1126 = vmatprep.subr.bf16.mxu0 0
        %1127 = vmatpush1.bf16.msra.mxu0 0
        %1128 = vmatprep.subr.bf16.mxu0 0
        %1129 = vmatpush1.bf16.msra.mxu0 0
        %1130 = vmatprep.subr.bf16.mxu0 0
        %1131 = vmatpush1.bf16.msra.mxu0 0
        %1132 = vmatprep.subr.bf16.mxu0 0
        %1133 = vmatpush1.bf16.msra.mxu0 0
        %1134 = vmatprep.mubr.bf16.mxu0 0
        %1135 = vmatmul.mubr.bf16.gmra.mrb[0].mxu0 %v1091
        %v1136 = vpop.f32.mrb[0].mxu0
        %v1137 = vadd.f32 0.0, %v1136
        %v1138 = vpop.f32.mrb[0].mxu0
        %v1139 = vadd.f32 0.0, %v1138
        %v1140 = vpop.f32.mrb[0].mxu0
        %v1141 = vadd.f32 0.0, %v1140
        %v1142 = vpop.f32.mrb[0].mxu0
        %v1143 = vadd.f32 0.0, %v1142
        %1144 = vmatprep.mubr.bf16.mxu0 0
        %1145 = vmatmul.mubr.bf16.gmra.mrb[0].mxu0 %v1094
        %v1146 = vpop.f32.mrb[0].mxu0
        %v1147 = vadd.f32 0.0, %v1146
        %v1148 = vpop.f32.mrb[0].mxu0
        %v1149 = vadd.f32 0.0, %v1148
        %v1150 = vpop.f32.mrb[0].mxu0
        %v1151 = vpop.f32.mrb[0].mxu0
        %1152 = vdwg.mxu0
        %v1153 = vadd.f32 %v1057, %v1137
        %v1154 = vadd.f32 %v1058, %v1139
        %v1155 = vadd.f32 %v1059, %v1141
        %v1156 = vadd.f32 %v1060, %v1143
        %v1157 = vadd.f32 %v1061, %v1147
        %v1158 = vadd.f32 %v1062, %v1149
        %1159 = vrot.lane.b32.xlu0 %v494, 34
        %v1160 = vpop.permute.xlu0 %1159
        %1161 = vrot.lane.b32.xlu0 %v498, 34
        %v1162 = vpop.permute.xlu0 %1161
        %vm1163 = vcmask 277504
        %v1164 = vsel %vm1163, %v1160, %v1162
        %vm1165 = vcmp.ne.s16.totalorder %v1160, 0
        %vm1166 = vcmp.ne.s16.totalorder %v1164, 0
        %vm1167 = vcmp.ne.s16.totalorder %v1162, 0
        %v1168 = vsel %vm1165, %v237, 0
        %v1169 = vsel %vm1166, %v230, 0
        %v1170 = vsel %vm1167, %v243, 0
        %v1171 = vsel %vm1165, %v240, 0
        %v1172 = vsel %vm1166, %v231, 0
        %v1173 = vsel %vm1167, %v246, 0
        %v1177 = vunpack.c.l.b16 %v303
        %v1178 = vunpack.c.l.b16 %v304
        %v1179 = vunpack.c.l.b16 %v305
        %v1180 = vpack.c.b16 %v1178, %v1177
        %v1181 = vpack.c.b16 %v1179, %v1179
        %1188 = vrot.lane.b32.xlu0 %v1168, 94
        %v1189 = vpop.permute.xlu0 %1188
        %1190 = vrot.lane.b32.xlu0 %v1169, 94
        %v1191 = vpop.permute.xlu0 %1190
        %1192 = vrot.lane.b32.xlu0 %v1170, 94
        %v1193 = vpop.permute.xlu0 %1192
        %1194 = vrot.lane.b32.xlu0 %v1171, 94
        %v1195 = vpop.permute.xlu0 %1194
        %1196 = vrot.lane.b32.xlu0 %v1172, 94
        %v1197 = vpop.permute.xlu0 %1196
        %1198 = vrot.lane.b32.xlu0 %v1173, 94
        %v1199 = vpop.permute.xlu0 %1198
        %vm1200 = vcmask 769024
        %v1201 = vsel %vm1200, %v1189, %v1191
        %v1202 = vsel %vm1200, %v1191, %v1193
        %v1203 = vsel %vm1200, %v1195, %v1197
        %v1204 = vsel %vm1200, %v1197, %v1199
        %v1208 = vsel %vm353, %v1180, 0
        %v1211 = vsel %vm353, %v1181, 0
        %v1214 = vsel %vm360, %v1203, 0
        %v1217 = vsel %vm360, %v1204, 0
        %1219 = vmatprep.subr.bf16.mxu0 %v1202
        %1220 = vmatpush1.bf16.msra.mxu0 %v1201
        %1221 = vmatprep.subr.bf16.mxu0 %v1217
        %1222 = vmatpush1.bf16.msra.mxu0 %v1214
        %1223 = vmatprep.subr.bf16.mxu0 0
        %1224 = vmatpush1.bf16.msra.mxu0 0
        %1225 = vmatprep.subr.bf16.mxu0 0
        %1226 = vmatpush1.bf16.msra.mxu0 0
        %1227 = vmatprep.subr.bf16.mxu0 0
        %1228 = vmatpush1.bf16.msra.mxu0 0
        %1229 = vmatprep.subr.bf16.mxu0 0
        %1230 = vmatpush1.bf16.msra.mxu0 0
        %1231 = vmatprep.subr.bf16.mxu0 0
        %1232 = vmatpush1.bf16.msra.mxu0 0
        %1233 = vmatprep.subr.bf16.mxu0 0
        %1234 = vmatpush1.bf16.msra.mxu0 0
        %1235 = vmatprep.subr.bf16.mxu0 0
        %1236 = vmatpush1.bf16.msra.mxu0 0
        %1237 = vmatprep.subr.bf16.mxu0 0
        %1238 = vmatpush1.bf16.msra.mxu0 0
        %1239 = vmatprep.subr.bf16.mxu0 0
        %1240 = vmatpush1.bf16.msra.mxu0 0
        %1241 = vmatprep.subr.bf16.mxu0 0
        %1242 = vmatpush1.bf16.msra.mxu0 0
        %1243 = vmatprep.subr.bf16.mxu0 0
        %1244 = vmatpush1.bf16.msra.mxu0 0
        %1245 = vmatprep.subr.bf16.mxu0 0
        %1246 = vmatpush1.bf16.msra.mxu0 0
        %1247 = vmatprep.subr.bf16.mxu0 0
        %1248 = vmatpush1.bf16.msra.mxu0 0
        %1249 = vmatprep.subr.bf16.mxu0 0
        %1250 = vmatpush1.bf16.msra.mxu0 0
        %1251 = vmatprep.mubr.bf16.mxu0 0
        %1252 = vmatmul.mubr.bf16.gmra.mrb[0].mxu0 %v1208
        %v1253 = vpop.f32.mrb[0].mxu0
        %v1254 = vadd.f32 0.0, %v1253
        %v1255 = vpop.f32.mrb[0].mxu0
        %v1256 = vadd.f32 0.0, %v1255
        %v1257 = vpop.f32.mrb[0].mxu0
        %v1258 = vadd.f32 0.0, %v1257
        %v1259 = vpop.f32.mrb[0].mxu0
        %v1260 = vadd.f32 0.0, %v1259
        %1261 = vmatprep.mubr.bf16.mxu0 0
        %1262 = vmatmul.mubr.bf16.gmra.mrb[0].mxu0 %v1211
        %v1263 = vpop.f32.mrb[0].mxu0
        %v1264 = vadd.f32 0.0, %v1263
        %v1265 = vpop.f32.mrb[0].mxu0
        %v1266 = vadd.f32 0.0, %v1265
        %v1267 = vpop.f32.mrb[0].mxu0
        %v1268 = vpop.f32.mrb[0].mxu0
        %1269 = vdwg.mxu0
        %v1270 = vadd.f32 %v1153, %v1254
        %v1271 = vadd.f32 %v1154, %v1256
        %v1272 = vadd.f32 %v1155, %v1258
        %v1273 = vadd.f32 %v1156, %v1260
        %v1274 = vadd.f32 %v1157, %v1264
        %v1275 = vadd.f32 %v1158, %v1266
        %v1276 = vld [vmem:[%s2] sm:$0xff]
        %v1277 = vld [vmem:[%s2 + $0x8] sm:$0xff]
        %v1278 = vld [vmem:[%s2 + $0x10] sm:$0xff]
        %1280 = vset.pattern.permute.xlu0 0
        %1281 = vperm.xlu0 %1280, %v1276
        %v1282 = vpop.permute.xlu0 %1281
        %1285 = vset.pattern.permute.xlu0 0
        %1286 = vperm.xlu0 %1285, %v1277
        %v1287 = vpop.permute.xlu0 %1286
        %1290 = vset.pattern.permute.xlu0 0
        %1291 = vperm.xlu0 %1290, %v1278
        %v1292 = vpop.permute.xlu0 %1291
        %v1294 = vadd.f32 %v1270, %v1282
        %v1295 = vadd.f32 %v1271, %v1282
        %v1296 = vadd.f32 %v1272, %v1287
        %v1297 = vadd.f32 %v1273, %v1287
        %v1298 = vadd.f32 %v1274, %v1292
        %v1299 = vadd.f32 %v1275, %v1292
        %v1300 = vmax.f32 %v1294, 0.0
        %v1301 = vmax.f32 %v1295, 0.0
        %v1302 = vmax.f32 %v1296, 0.0
        %v1303 = vmax.f32 %v1297, 0.0
        %v1304 = vmax.f32 %v1298, 0.0
        %v1305 = vmax.f32 %v1299, 0.0
        %1306 = vst [vmem:[%s203] sm:$0xff] %v1300
        %1307 = vst [vmem:[%s203 + $0x8] sm:$0xff] %v1301
        %1308 = vst [vmem:[%s203 + $0x10] sm:$0xff] %v1302
        %1309 = vst [vmem:[%s203 + $0x18] sm:$0xff] %v1303
        %1310 = vst [vmem:[%s203 + $0x20] sm:$0xff] %v1304
        %1311 = vst [vmem:[%s203 + $0x28] sm:$0xff] %v1305
        %s1312 = sand.u32 %s97, 1
        %s1313 = scalar_lea.sflag [#allocation4], %s1312
        %s1314 = sand.u32 %s97, 1
        %s1315 = smul.addr %s1314, 48
        %s1316 = scalar_lea.vmem [#allocation7], %s1315
        // Predicated region
        $region41: #{tpu_custom_call.1} parent=31 // pred_check
          %p1317 = pneg %p107
        $region42: #{tpu_custom_call.1} parent=31 // pred_check_branch
          %1319 = sbr.rel (%p1317) target = $region44
        $region43: #{tpu_custom_call.1} parent=31 // pred_region
          %s1321 = ssub.s32 768, 768
          %1322 = vsyncadd %s1313, %s1321
          %s1323 = smul.addr %s21, 6
          %s1324 = smul.addr %s1323, 128
          %s1325 = scalar_lea.hbm %s3, %s1324
          %s1326 = sshll.u32 %s1316, 4
          %s1327 = int_to_ptr.vmem [resolvable:$true] %s1326
          %1332 = dma.vmem_to_hbm [thread:$0]  %s1327, 768, %s1325, %s1313, 256, 256, 16
        $region44: #{tpu_custom_call.1} parent=31 // pred_fallthru
          _
      $region32: #{tpu_custom_call.1} parent=5 // pred_fallthru
        _
      %p1333 = scmp.le.s32.totalorder 2, %s16
      // Predicated region
      $region45: #{tpu_custom_call.1} parent=5 // pred_check
        %p1334 = pneg %p1333
      $region46: #{tpu_custom_call.1} parent=5 // pred_check_branch
        %1336 = sbr.rel (%p1334) target = $region48
      $region47: #{tpu_custom_call.1} parent=5 // pred_region
        %s1337 = ssub.s32 %s16, 2
        // Predicated region
        $region49: #{tpu_custom_call.1} parent=47 // pred_check
          %p1338 = pneg %p113
        $region50: #{tpu_custom_call.1} parent=47 // pred_check_branch
          %1340 = sbr.rel (%p1338) target = $region52
        $region51: #{tpu_custom_call.1} parent=47 // pred_region
          %s1341 = sand.u32 %s98, 1
          %s1342 = scalar_lea.sflag [#allocation4], %s1341
          %s1343 = sand.u32 %s98, 1
          %s1344 = smul.addr %s1343, 48
          %s1345 = scalar_lea.vmem [#allocation7], %s1344
          %1346 = dma.done %s1342, 768
        $region52: #{tpu_custom_call.1} parent=47 // pred_fallthru
          _
      $region48: #{tpu_custom_call.1} parent=5 // pred_fallthru
        _
    $region6: #{tpu_custom_call.1} parent=1 // loop_footer
      %s20 = sadd.s32 1, %s16
    $region7: #{tpu_custom_call.1} parent=1 // loop_footer_branch
      %15 = sbr.rel target = $region3
    $region8: #{tpu_custom_call.1} parent=1 // loop_exit
      _
    %1347 = vsyncpa [#allocation3], 1
    %s1348 = scalar_lea.sflag [#allocation3], 1
    %1349 = vsyncpa %s1348, 1
    %1350 = vsyncpa [#allocation6], 1
    %1351 = vsyncpa [#allocation4], 1
    %s1352 = scalar_lea.sflag [#allocation4], 1
    %1353 = vsyncpa %s1352, 1

</llo_original>
